<compile_context>
chip_gen: v5e
topology: v5e:2x2
jax: 0.10.0
libtpu: 0.0.40
codegen_flags: <defaults>
</compile_context>

<pallas_src>
import jax
import jax.numpy as jnp
from jax.experimental import pallas as pl
from jax.experimental.pallas import tpu as pltpu


def _layer_sizes(input_size):
    # (in, out) per Linear layer of MLP_new (final layer fixed up, see TODO above).
    return [(input_size, 2048), (2048, 1024), (1024, 512), (512, 224), (224, 1)]


def init_mlp_params(input_size=768, seed=0):
    """Matches MLP_new.__init__: weight ~ N(0, 1/(input_size+1)), bias = 0.
    Weights are stored as (in, out) so the kernel computes y = x @ W + b,
    which equals PyTorch's x @ weight.T + bias."""
    std = 1.0 / (input_size + 1)
    key = jax.random.PRNGKey(seed)
    params = []
    for fan_in, fan_out in _layer_sizes(input_size):
        key, wk = jax.random.split(key)
        w = jax.random.normal(wk, (fan_in, fan_out), dtype=jnp.float32) * std
        b = jnp.zeros((1, fan_out), dtype=jnp.float32)
        params.append((w, b))
    return params


def fold_mlp_params(params):
    """Fold the entire linear chain (Dropout == identity at inference, no
    activations) into a single (D, 1) weight and (1, 1) bias:
        y = x @ (W1 @ W2 @ ... @ W5) + (b1 @ W2..W5 + b2 @ W3..W5 + ... + b5)
    Folded right-to-left so every intermediate product is a thin (K, 1) column
    (a few MFLOPs total). Done once, outside the Pallas kernel."""
    w_f, b_f = params[-1]
    w_f = w_f.astype(jnp.float32)
    b_f = b_f.astype(jnp.float32)
    for (w, b) in reversed(params[:-1]):
        # Use the *old* w_f for the bias contribution, then update w_f.
        b_f = jnp.dot(b.astype(jnp.float32), w_f,
                      precision=jax.lax.Precision.HIGHEST) + b_f
        w_f = jnp.dot(w.astype(jnp.float32), w_f,
                      precision=jax.lax.Precision.HIGHEST)
    return w_f, b_f  # (D, 1), (1, 1)


def _folded_mlp_kernel(x_ref, w_ref, b_ref, o_ref):
    """One MXU matvec per batch tile: y = x_tile @ W_fold + b_fold.
    x/w may be bf16; accumulation is f32 on the MXU. b_ref is a (1,1) scalar
    in SMEM, broadcast-added on the VPU."""
    acc = jnp.dot(x_ref[...], w_ref[...], preferred_element_type=jnp.float32)
    o_ref[...] = (acc + b_ref[0, 0]).astype(o_ref.dtype)


def _round_up(v, m):
    return ((v + m - 1) // m) * m


def mlp_new_forward(x, w_fold, b_fold, *, batch_tile=1024, min_pallas_batch=64):
    """x: [B, D] (f32 or bf16); w_fold: [D, 1] f32; b_fold: [1, 1] f32.
    Returns [B, 1] float32."""
    B, D = x.shape
    assert w_fold.shape == (D, 1) and b_fold.shape == (1, 1)

    # Small-batch fast path: at serving sizes (B <= ~64) the pallas_call launch
    # plus one grid step dominates; a plain XLA dot is faster and can fuse with
    # surrounding ops.
    if B <= min_pallas_batch:
        return (jnp.dot(x.astype(jnp.float32), w_fold.astype(jnp.float32),
                        preferred_element_type=jnp.float32)
                + b_fold.astype(jnp.float32))

    # Match the weight dtype to the activation dtype (bf16 in -> bf16 MXU
    # operands); the folded weight is only ~3 KB either way.
    w_k = w_fold.astype(x.dtype)
    b_k = b_fold.astype(jnp.float32)

    # Batch tile: as large as possible (amortizes the ~0.35 us/step overhead
    # and approaches the HBM roofline), but capped so the grid keeps >= 2
    # steps, letting the "parallel" batch axis shard across v7x's two
    # TensorCores. Always a multiple of 8 (sublane).
    tb = max(8, min(batch_tile, _round_up(pl.cdiv(B, 2), 8)))
    grid = (pl.cdiv(B, tb),)   # ragged last block handled by Pallas masking; no pad copy

    out = pl.pallas_call(
        _folded_mlp_kernel,
        out_shape=jax.ShapeDtypeStruct((B, 1), jnp.float32),
        grid_spec=pltpu.PrefetchScalarGridSpec(
            num_scalar_prefetch=0,
            grid=grid,
            in_specs=[
                # Batch tile of activations (the only significant HBM stream).
                pl.BlockSpec((tb, D), lambda i: (i, 0)),
                # Folded weight (~3 KB): constant block index -> stays resident
                # in VMEM, no re-DMA per grid step.
                pl.BlockSpec((D, 1), lambda i: (0, 0)),
                # Folded bias: single scalar, lives in SMEM.
                pl.BlockSpec(memory_space=pltpu.MemorySpace.SMEM),
            ],
            # NOTE: the (tb, 1) output lowers to masked 1-lane stores, but at
            # 4 B/row of writes vs ~1.5-3 KB/row of reads this is negligible;
            # do not transpose x just to make the output lane-dense.
            out_specs=pl.BlockSpec((tb, 1), lambda i: (i, 0)),
        ),
        compiler_params=pltpu.CompilerParams(
            # Batch axis is independent -> shards tiles across both
            # TensorCores on v7x; harmless single-core loop on v5e/v6e.
            dimension_semantics=("parallel",),
            # Double-buffered (tb x D) tiles are <= 6 MiB at tb=1024 f32;
            # 32 MiB fits every generation (incl. v7x's 64 MiB/TC physical
            # VMEM and 32 MiB scoped default).
            vmem_limit_bytes=32 << 20,
        ),
    )(x, w_k, b_k)
    return out


def _reference_mlp(x, params):
    """Layered (unfolded) reference, matching the PyTorch Sequential at eval."""
    h = x.astype(jnp.float32)
    for (w, b) in params:
        h = jnp.dot(h, w, precision=jax.lax.Precision.HIGHEST) + b
    return h


if __name__ == "__main__":
    D = 768  # ImageReward-style hidden size
    params = init_mlp_params(input_size=D, seed=0)
    w_fold, b_fold = fold_mlp_params(params)  # fold once, outside pallas_call

    key = jax.random.PRNGKey(0)
    k1, k2 = jax.random.split(key)

    # 1) Pallas path: batch big enough to tile, intentionally NOT a multiple of
    #    the tile or of 8 (exercises the ragged last block / masked writes),
    #    bf16 activations (exercises the halved-traffic path).
    B = 203
    x = jax.random.normal(k1, (B, D), dtype=jnp.float32).astype(jnp.bfloat16)
    out = jax.block_until_ready(mlp_new_forward(x, w_fold, b_fold))
    ref = jax.block_until_ready(_reference_mlp(x.astype(jnp.float32), params))
    assert out.shape == (B, 1)
    # Differences: fold re-association + bf16 folded weight (outputs ~1e-7
    # scale, errors ~1e-10).
    assert jnp.allclose(out, ref, atol=1e-6, rtol=2e-2), float(jnp.max(jnp.abs(out - ref)))

    # 2) Small-batch fast path (plain XLA dot), f32.
    B2 = 2
    x2 = jax.random.normal(k2, (B2, D), dtype=jnp.float32)
    out2 = jax.block_until_ready(mlp_new_forward(x2, w_fold, b_fold))
    ref2 = jax.block_until_ready(_reference_mlp(x2, params))
    assert out2.shape == (B2, 1)
    assert jnp.allclose(out2, ref2, atol=1e-6, rtol=1e-3)

    print("KERNEL_OK")
</pallas_src>

<mosaic_0001>
module attributes {stable_mosaic.version = 11 : i64} {
  func.func @_folded_mlp_kernel(%arg0: i32, %arg1: memref<104x768xbf16, #tpu.memory_space<vmem>>, %arg2: memref<768x1xbf16, #tpu.memory_space<vmem>>, %arg3: memref<1x1xf32, #tpu.memory_space<smem>>, %arg4: memref<104x1xf32, #tpu.memory_space<vmem>>) attributes {dimension_semantics = [#tpu.dimension_semantics<parallel>], iteration_bounds = array<i64: 2>, scalar_prefetch = 0 : i64, scratch_operands = 0 : i64, tpu.core_type = #tpu.core_type<tc>, window_params = [{transform_indices = @transform_0, window_bounds = array<i64: 104, 768>}, {pipeline_mode = #tpu.pipeline_mode<synchronous>, transform_indices = @transform_1, window_bounds = array<i64: 768, 1>}, {transform_indices = @transform_2, window_bounds = array<i64: 1, 1>}, {transform_indices = @transform_3, window_bounds = array<i64: 104, 1>}]} {
    %c0 = arith.constant 0 : index
    %c0_0 = arith.constant 0 : index
    %0 = vector.load %arg1[%c0, %c0_0] : memref<104x768xbf16, #tpu.memory_space<vmem>>, vector<104x768xbf16>
    %c0_1 = arith.constant 0 : index
    %c0_2 = arith.constant 0 : index
    %1 = vector.load %arg2[%c0_1, %c0_2] : memref<768x1xbf16, #tpu.memory_space<vmem>>, vector<768x1xbf16>
    %cst = arith.constant dense<0.000000e+00> : vector<104x1xf32>
    %2 = tpu.matmul %0, %1, %cst {dimension_numbers = #tpu.dot_dimension_numbers<[1], [0], [0], [1], [0, 0, 1, 1], [], []>} : vector<104x768xbf16>, vector<768x1xbf16>, vector<104x1xf32> -> vector<104x1xf32>
    %c0_3 = arith.constant 0 : index
    %c0_4 = arith.constant 0 : index
    %3 = memref.load %arg3[%c0_3, %c0_4] : memref<1x1xf32, #tpu.memory_space<smem>>
    %4 = vector.broadcast %3 : f32 to vector<104x1xf32>
    %5 = arith.addf %2, %4 : vector<104x1xf32>
    %c0_5 = arith.constant 0 : index
    %c0_6 = arith.constant 0 : index
    %6 = vector.load %arg4[%c0_5, %c0_6] : memref<104x1xf32, #tpu.memory_space<vmem>>, vector<104x1xf32>
    tpu.vector_store %arg4[%c0_5, %c0_6], %5 {strides = array<i32>} : memref<104x1xf32, #tpu.memory_space<vmem>>, vector<104x1xf32>,
    return
  }
  func.func @transform_0(%arg0: i32) -> (i32, i32) {
    %c0_i32 = arith.constant 0 : i32
    %c0_i32_0 = arith.constant 0 : i32
    return %arg0, %c0_i32 : i32, i32
  }
  func.func @transform_1(%arg0: i32) -> (i32, i32) {
    %c0_i32 = arith.constant 0 : i32
    %c0_i32_0 = arith.constant 0 : i32
    %c0_i32_1 = arith.constant 0 : i32
    return %c0_i32, %c0_i32_0 : i32, i32
  }
  func.func @transform_2(%arg0: i32) -> (i32, i32) {
    %c0_i32 = arith.constant 0 : i32
    %c0_i32_0 = arith.constant 0 : i32
    %c0_i32_1 = arith.constant 0 : i32
    return %c0_i32, %c0_i32_0 : i32, i32
  }
  func.func @transform_3(%arg0: i32) -> (i32, i32) {
    %c0_i32 = arith.constant 0 : i32
    %c0_i32_0 = arith.constant 0 : i32
    return %arg0, %c0_i32 : i32, i32
  }
}

</mosaic_0001>

<llo_original>
// kernel: tpu_custom_call.1
$region0: #{tpu_custom_call.1}
  #allocation0 [shape = 'u32[]', space=smem, size = 0x4, offset = 0x4, fixed_abs, tag = 'smem constant byte address 0x4 - core index']
  #allocation1 [shape = 'u32[72,128]{1,0:T(1,128)}', space=vmem, size = 0x9000, scoped, tag = 'internal scratch']
  #allocation2 [shape = 'f32[1,1]{1,0:T(1,128)S(6)}', space=smem, size = 0x200, scoped, tag = 'scoped memory for tpu_custom_call.1']
  %s0 = inlined_call_operand.hbm [shape: bf16[203,768], index: 0, kind: input, shape index: {}]
  %s1 = inlined_call_operand.vmem [shape: bf16[768,1], index: 1, kind: input, shape index: {}]
  %s2 = inlined_call_operand.<no memory space> [shape: f32[1,1], index: 2, kind: input, shape index: {}]
  %s3 = inlined_call_operand.vmem [shape: f32[203,1], index: 3, kind: output, shape index: {}]
  %s4 = sld [smem:[#allocation0]]
  $region49: #{tpu_custom_call.1} parent=0
    _
  %s6 = ssub.s32 1, %s4
  %s7 = scalar_select 0, %s6, %s4
  %8 = sst [smem:[#allocation2]] %s2
  $region1: #{tpu_custom_call.1} parent=0
    #allocation3 [shape = 'u8[319488]{0}', space=vmem, size = 0x4e000, scoped, tag = 'input window, operand 0']
    #allocation4 [shape = 's32[2]{0}', space=sflag, size = 0x8, scoped, tag = 'scoped memory for tpu_custom_call.1']
    %9 = vsyncpa [#allocation4], 0
    %s10 = scalar_lea.sflag [#allocation4], 1
    %11 = vsyncpa %s10, 0
    loop: start=0, step=1, limit=4
    $region2: #{tpu_custom_call.1} parent=1 // loop_pre_header
      _
    $region3: #{tpu_custom_call.1} parent=1 // loop_header
      %s13 = sphi 0, %s17
      %p14 = scmp.ge.s32.totalorder %s13, 4
      %s23 = sphi 0, %s25
      %s26 = sphi 0, %s23
      %s27 = sphi 0, %s26
      %s43 = sphi 0, %s27
      %s47 = sphi 0, %s47
      %s49 = sphi 0, %s47
      %s50 = sphi 0, %s49
      %s64 = sphi 0, %s50
      %s68 = sphi 0, %s68
      %s70 = sphi 0, %s68
      %s71 = sphi 0, %s70
      %s85 = sphi 0, %s71
      %s91 = sphi 0, %s93
      %s94 = sphi 0, %s91
      %s95 = sphi 0, %s94
      %s111 = sphi 0, %s95
    $region4: #{tpu_custom_call.1} parent=1 // loop_header_branch
      %16 = sbr.rel (%p14) target = $region8
    $region5: #{tpu_custom_call.1} parent=1 // loop_body
      %s18 = ssub.s32 %s13, 1
      %s19 = ssub.s32 %s13, 2
      %s20 = sadd.s32 %s13, 1
      %s21 = ssub.s32 %s13, %s20
      %p22 = scmp.eq.s32.totalorder %s21, 0
      %s24 = sadd.s32 %s23, 1
      %s25 = scalar_select %p22, %s23, %s24
      %p28 = pneg %p22
      %p29 = scmp.eq.s32.totalorder %s13, 1
      %p30 = por %p28, %p29
      %p31 = scmp.ne.s32.totalorder %s23, %s26
      %p32 = scmp.eq.s32.totalorder %s13, 0
      %p33 = por %p31, %p32
      %p34 = scmp.ne.s32.totalorder %s23, %s26
      %p35 = scmp.eq.s32.totalorder %s18, 1
      %p36 = por %p34, %p35
      %p37 = scmp.ne.s32.totalorder %s26, %s27
      %p38 = scmp.eq.s32.totalorder %s18, 0
      %p39 = por %p37, %p38
      %p40 = scmp.ne.s32.totalorder %s26, %s27
      %p41 = scmp.eq.s32.totalorder %s19, 1
      %p42 = por %p40, %p41
      %p44 = scmp.ne.s32.totalorder %s27, %s43
      %p45 = scmp.eq.s32.totalorder %s19, 0
      %p46 = por %p44, %p45
      %s48 = sadd.s32 %s47, 1
      %p51 = scmp.eq.s32.totalorder %s13, 1
      %p52 = scmp.ne.s32.totalorder %s47, %s49
      %p53 = scmp.eq.s32.totalorder %s13, 0
      %p54 = por %p52, %p53
      %p55 = scmp.ne.s32.totalorder %s47, %s49
      %p56 = scmp.eq.s32.totalorder %s18, 1
      %p57 = por %p55, %p56
      %p58 = scmp.ne.s32.totalorder %s49, %s50
      %p59 = scmp.eq.s32.totalorder %s18, 0
      %p60 = por %p58, %p59
      %p61 = scmp.ne.s32.totalorder %s49, %s50
      %p62 = scmp.eq.s32.totalorder %s19, 1
      %p63 = por %p61, %p62
      %p65 = scmp.ne.s32.totalorder %s50, %s64
      %p66 = scmp.eq.s32.totalorder %s19, 0
      %p67 = por %p65, %p66
      %s69 = sadd.s32 %s68, 1
      %p72 = scmp.eq.s32.totalorder %s13, 1
      %p73 = scmp.ne.s32.totalorder %s68, %s70
      %p74 = scmp.eq.s32.totalorder %s13, 0
      %p75 = por %p73, %p74
      %p76 = scmp.ne.s32.totalorder %s68, %s70
      %p77 = scmp.eq.s32.totalorder %s18, 1
      %p78 = por %p76, %p77
      %p79 = scmp.ne.s32.totalorder %s70, %s71
      %p80 = scmp.eq.s32.totalorder %s18, 0
      %p81 = por %p79, %p80
      %p82 = scmp.ne.s32.totalorder %s70, %s71
      %p83 = scmp.eq.s32.totalorder %s19, 1
      %p84 = por %p82, %p83
      %p86 = scmp.ne.s32.totalorder %s71, %s85
      %p87 = scmp.eq.s32.totalorder %s19, 0
      %p88 = por %p86, %p87
      %s89 = ssub.s32 %s13, %s20
      %p90 = scmp.eq.s32.totalorder %s89, 0
      %s92 = sadd.s32 %s91, 1
      %s93 = scalar_select %p90, %s91, %s92
      %p96 = pneg %p90
      %p97 = scmp.eq.s32.totalorder %s13, 1
      %p98 = por %p96, %p97
      %p99 = scmp.ne.s32.totalorder %s91, %s94
      %p100 = scmp.eq.s32.totalorder %s13, 0
      %p101 = por %p99, %p100
      %p102 = scmp.ne.s32.totalorder %s91, %s94
      %p103 = scmp.eq.s32.totalorder %s18, 1
      %p104 = por %p102, %p103
      %p105 = scmp.ne.s32.totalorder %s94, %s95
      %p106 = scmp.eq.s32.totalorder %s18, 0
      %p107 = por %p105, %p106
      %p108 = scmp.ne.s32.totalorder %s94, %s95
      %p109 = scmp.eq.s32.totalorder %s19, 1
      %p110 = por %p108, %p109
      %p112 = scmp.ne.s32.totalorder %s95, %s111
      %p113 = scmp.eq.s32.totalorder %s19, 0
      %p114 = por %p112, %p113
      %p115 = scmp.le.s32.totalorder 1, %s13
      %p116 = scmp.lt.s32.totalorder %s13, 3
      %p117 = pnand %p115, %p116
      %p118 = pneg %p117
      // Predicated region
      $region9: #{tpu_custom_call.1} parent=5 // pred_check
        _
      $region10: #{tpu_custom_call.1} parent=5 // pred_check_branch
        %120 = sbr.rel (%p117) target = $region12
      $region11: #{tpu_custom_call.1} parent=5 // pred_region
        %s121 = ssub.s32 %s13, 1
        // Predicated region
        $region13: #{tpu_custom_call.1} parent=11 // pred_check
          %p122 = pneg %p60
        $region14: #{tpu_custom_call.1} parent=11 // pred_check_branch
          %124 = sbr.rel (%p122) target = $region16
        $region15: #{tpu_custom_call.1} parent=11 // pred_region
          _
        $region16: #{tpu_custom_call.1} parent=11 // pred_fallthru
          _
        // Predicated region
        $region17: #{tpu_custom_call.1} parent=11 // pred_check
          %p125 = pneg %p81
        $region18: #{tpu_custom_call.1} parent=11 // pred_check_branch
          %127 = sbr.rel (%p125) target = $region20
        $region19: #{tpu_custom_call.1} parent=11 // pred_region
          _
        $region20: #{tpu_custom_call.1} parent=11 // pred_fallthru
          _
      $region12: #{tpu_custom_call.1} parent=5 // pred_fallthru
        _
      %p128 = scmp.lt.s32.totalorder %s13, 2
      // Predicated region
      $region21: #{tpu_custom_call.1} parent=5 // pred_check
        %p129 = pneg %p128
      $region22: #{tpu_custom_call.1} parent=5 // pred_check_branch
        %131 = sbr.rel (%p129) target = $region24
      $region23: #{tpu_custom_call.1} parent=5 // pred_region
        // Predicated region
        $region25: #{tpu_custom_call.1} parent=23 // pred_check
          %p132 = pneg %p33
        $region26: #{tpu_custom_call.1} parent=23 // pred_check_branch
          %134 = sbr.rel (%p132) target = $region28
        $region27: #{tpu_custom_call.1} parent=23 // pred_region
          %s135 = sand.u32 %s23, 1
          %s136 = scalar_lea.sflag [#allocation4], %s135
          %s137 = sand.u32 %s23, 1
          %s138 = smul.addr %s137, 312
          %s139 = scalar_lea.vmem [#allocation3], %s138
          %s140 = smul.u32 13, %s13
          %142 = vsyncadd %s136, 0
          %s143 = smul.addr %s140, 6
          %s144 = smul.addr %s143, 4
          %s145 = scalar_lea.hbm %s0, %s144
          %s146 = sshll.u32 %s145, 4
          %s147 = int_to_ptr.hbm [resolvable:$true] %s146
          %s148 = sshll.u32 %s139, 4
          %s149 = int_to_ptr.vmem [resolvable:$true] %s148
          %154 = dma.hbm_to_vmem [thread:$0]  %s147, 4992, %s149, %s136, 384, 384, 24
        $region28: #{tpu_custom_call.1} parent=23 // pred_fallthru
          _
      $region24: #{tpu_custom_call.1} parent=5 // pred_fallthru
        _
      %p155 = scmp.le.s32.totalorder 1, %s13
      %p156 = scmp.lt.s32.totalorder %s13, 3
      %p157 = pnand %p155, %p156
      %p158 = pneg %p157
      // Predicated region
      $region29: #{tpu_custom_call.1} parent=5 // pred_check
        _
      $region30: #{tpu_custom_call.1} parent=5 // pred_check_branch
        %160 = sbr.rel (%p157) target = $region32
      $region31: #{tpu_custom_call.1} parent=5 // pred_region
        %s161 = ssub.s32 %s13, 1
        %s162 = sand.u32 %s26, 1
        %s163 = scalar_lea.sflag [#allocation4], %s162
        %s164 = sand.u32 %s26, 1
        %s165 = smul.addr %s164, 312
        %s166 = scalar_lea.vmem [#allocation3], %s165
        // Predicated region
        $region33: #{tpu_custom_call.1} parent=31 // pred_check
          %p167 = pneg %p39
        $region34: #{tpu_custom_call.1} parent=31 // pred_check_branch
          %169 = sbr.rel (%p167) target = $region36
        $region35: #{tpu_custom_call.1} parent=31 // pred_region
          %171 = dma.done %s163, 4992
        $region36: #{tpu_custom_call.1} parent=31 // pred_fallthru
          _
        %s172 = sand.u32 %s26, 1
        %s173 = scalar_lea.sflag [#allocation4], %s172
        %s174 = sand.u32 %s26, 1
        %s175 = smul.addr %s174, 312
        %s176 = scalar_lea.vmem [#allocation3], %s175
        %p177 = pneg %p39
        %p178 = pneg %p36
        %p179 = pneg %p60
        %p180 = pneg %p57
        %p181 = pneg %p81
        %p182 = pneg %p78
        %p183 = pneg %p107
        %p184 = pneg %p104
        %s185 = smul.u32 13, %s18
        %p186 = scmp.lt.s32.totalorder %s185, 25
        %s187 = scalar_select %p186, %s185, 25
        %s188 = smul.addr %s187, 8
        %s189 = scalar_lea.vmem %s3, %s188
        %s190 = smul.u32 13, %s18
        %s191 = smul.u32 13, %s18
        %p192 = scmp.lt.s32.totalorder %s191, 25
        %s193 = scalar_select %p192, %s191, 25
        %s194 = smul.addr %s193, 8
        %s195 = scalar_lea.vmem %s3, %s194
        %s196 = smul.u32 13, %s18
        %v197 = vld [vmem:[%s166] sm:$0xff]
        %v198 = vld [vmem:[%s166 + $0x8] sm:$0xff]
        %v199 = vld [vmem:[%s166 + $0x10] sm:$0xff]
        %v200 = vld [vmem:[%s166 + $0x18] sm:$0xff]
        %v201 = vld [vmem:[%s166 + $0x20] sm:$0xff]
        %v202 = vld [vmem:[%s166 + $0x28] sm:$0xff]
        %v203 = vld [vmem:[%s166 + $0x30] sm:$0xff]
        %v204 = vld [vmem:[%s166 + $0x38] sm:$0xff]
        %v205 = vld [vmem:[%s166 + $0x40] sm:$0xff]
        %v206 = vld [vmem:[%s166 + $0x48] sm:$0xff]
        %v207 = vld [vmem:[%s166 + $0x50] sm:$0xff]
        %v208 = vld [vmem:[%s166 + $0x58] sm:$0xff]
        %v209 = vld [vmem:[%s166 + $0x60] sm:$0xff]
        %v210 = vld [vmem:[%s166 + $0x68] sm:$0xff]
        %v211 = vld [vmem:[%s166 + $0x70] sm:$0xff]
        %v212 = vld [vmem:[%s166 + $0x78] sm:$0xff]
        %v213 = vld [vmem:[%s166 + $0x80] sm:$0xff]
        %v214 = vld [vmem:[%s166 + $0x88] sm:$0xff]
        %v215 = vld [vmem:[%s166 + $0x90] sm:$0xff]
        %v216 = vld [vmem:[%s166 + $0x98] sm:$0xff]
        %v217 = vld [vmem:[%s166 + $0xa0] sm:$0xff]
        %v218 = vld [vmem:[%s166 + $0xa8] sm:$0xff]
        %v219 = vld [vmem:[%s166 + $0xb0] sm:$0xff]
        %v220 = vld [vmem:[%s166 + $0xb8] sm:$0xff]
        %v221 = vld [vmem:[%s166 + $0xc0] sm:$0xff]
        %v222 = vld [vmem:[%s166 + $0xc8] sm:$0xff]
        %v223 = vld [vmem:[%s166 + $0xd0] sm:$0xff]
        %v224 = vld [vmem:[%s166 + $0xd8] sm:$0xff]
        %v225 = vld [vmem:[%s166 + $0xe0] sm:$0xff]
        %v226 = vld [vmem:[%s166 + $0xe8] sm:$0xff]
        %v227 = vld [vmem:[%s166 + $0xf0] sm:$0xff]
        %v228 = vld [vmem:[%s166 + $0xf8] sm:$0xff]
        %v229 = vld [vmem:[%s166 + $0x100] sm:$0xff]
        %v230 = vld [vmem:[%s166 + $0x108] sm:$0xff]
        %v231 = vld [vmem:[%s166 + $0x110] sm:$0xff]
        %v232 = vld [vmem:[%s166 + $0x118] sm:$0xff]
        %v233 = vld [vmem:[%s166 + $0x120] sm:$0xff]
        %v234 = vld [vmem:[%s166 + $0x128] sm:$0xff]
        %v235 = vld [vmem:[%s166 + $0x130] sm:$0xff]
        %v236 = vld [vmem:[%s1] sm:$0xf]
        %v237 = vld [vmem:[%s1 + $0x4] sm:$0xf]
        %v238 = vld [vmem:[%s1 + $0x8] sm:$0xf]
        %v239 = vld [vmem:[%s1 + $0xc] sm:$0xf]
        %v240 = vld [vmem:[%s1 + $0x10] sm:$0xf]
        %v241 = vld [vmem:[%s1 + $0x14] sm:$0xf]
        %v242 = vld [vmem:[%s1 + $0x18] sm:$0xf]
        %v243 = vld [vmem:[%s1 + $0x1c] sm:$0xf]
        %v244 = vld [vmem:[%s1 + $0x20] sm:$0xf]
        %v245 = vld [vmem:[%s1 + $0x24] sm:$0xf]
        %v246 = vld [vmem:[%s1 + $0x28] sm:$0xf]
        %v247 = vld [vmem:[%s1 + $0x2c] sm:$0xf]
        %v248 = vld [vmem:[%s1 + $0x30] sm:$0xf]
        %v249 = vld [vmem:[%s1 + $0x34] sm:$0xf]
        %v250 = vld [vmem:[%s1 + $0x38] sm:$0xf]
        %v251 = vld [vmem:[%s1 + $0x3c] sm:$0xf]
        %v252 = vld [vmem:[%s1 + $0x40] sm:$0xf]
        %v253 = vld [vmem:[%s1 + $0x44] sm:$0xf]
        %v254 = vld [vmem:[%s1 + $0x48] sm:$0xf]
        %v255 = vld [vmem:[%s1 + $0x4c] sm:$0xf]
        %v256 = vld [vmem:[%s1 + $0x50] sm:$0xf]
        %v257 = vld [vmem:[%s1 + $0x54] sm:$0xf]
        %v258 = vld [vmem:[%s1 + $0x58] sm:$0xf]
        %v259 = vld [vmem:[%s1 + $0x5c] sm:$0xf]
        %v260 = vld [vmem:[%s1 + $0x60] sm:$0xf]
        %v261 = vld [vmem:[%s1 + $0x64] sm:$0xf]
        %v262 = vld [vmem:[%s1 + $0x68] sm:$0xf]
        %v263 = vld [vmem:[%s1 + $0x6c] sm:$0xf]
        %v264 = vld [vmem:[%s1 + $0x70] sm:$0xf]
        %v265 = vld [vmem:[%s1 + $0x74] sm:$0xf]
        %v266 = vld [vmem:[%s1 + $0x78] sm:$0xf]
        %v267 = vld [vmem:[%s1 + $0x7c] sm:$0xf]
        %v268 = vld [vmem:[%s1 + $0x80] sm:$0xf]
        %v269 = vld [vmem:[%s1 + $0x84] sm:$0xf]
        %v270 = vld [vmem:[%s1 + $0x88] sm:$0xf]
        %v271 = vld [vmem:[%s1 + $0x8c] sm:$0xf]
        %v272 = vld [vmem:[%s1 + $0x90] sm:$0xf]
        %v273 = vld [vmem:[%s1 + $0x94] sm:$0xf]
        %v274 = vld [vmem:[%s1 + $0x98] sm:$0xf]
        %v275 = vld [vmem:[%s1 + $0x9c] sm:$0xf]
        %v276 = vld [vmem:[%s1 + $0xa0] sm:$0xf]
        %v277 = vld [vmem:[%s1 + $0xa4] sm:$0xf]
        %v278 = vld [vmem:[%s1 + $0xa8] sm:$0xf]
        %v279 = vld [vmem:[%s1 + $0xac] sm:$0xf]
        %v280 = vld [vmem:[%s1 + $0xb0] sm:$0xf]
        %v281 = vld [vmem:[%s1 + $0xb4] sm:$0xf]
        %v282 = vld [vmem:[%s1 + $0xb8] sm:$0xf]
        %v283 = vld [vmem:[%s1 + $0xbc] sm:$0xf]
        %v284 = vld [vmem:[%s1 + $0xc0] sm:$0xf]
        %v285 = vld [vmem:[%s1 + $0xc4] sm:$0xf]
        %v286 = vld [vmem:[%s1 + $0xc8] sm:$0xf]
        %v287 = vld [vmem:[%s1 + $0xcc] sm:$0xf]
        %v288 = vld [vmem:[%s1 + $0xd0] sm:$0xf]
        %v289 = vld [vmem:[%s1 + $0xd4] sm:$0xf]
        %v290 = vld [vmem:[%s1 + $0xd8] sm:$0xf]
        %v291 = vld [vmem:[%s1 + $0xdc] sm:$0xf]
        %v292 = vld [vmem:[%s1 + $0xe0] sm:$0xf]
        %v293 = vld [vmem:[%s1 + $0xe4] sm:$0xf]
        %v294 = vld [vmem:[%s1 + $0xe8] sm:$0xf]
        %v295 = vld [vmem:[%s1 + $0xec] sm:$0xf]
        %v296 = vld [vmem:[%s1 + $0xf0] sm:$0xf]
        %v297 = vld [vmem:[%s1 + $0xf4] sm:$0xf]
        %v298 = vld [vmem:[%s1 + $0xf8] sm:$0xf]
        %v299 = vld [vmem:[%s1 + $0xfc] sm:$0xf]
        %v300 = vld [vmem:[%s1 + $0x100] sm:$0xf]
        %v301 = vld [vmem:[%s1 + $0x104] sm:$0xf]
        %v302 = vld [vmem:[%s1 + $0x108] sm:$0xf]
        %v303 = vld [vmem:[%s1 + $0x10c] sm:$0xf]
        %v304 = vld [vmem:[%s1 + $0x110] sm:$0xf]
        %v305 = vld [vmem:[%s1 + $0x114] sm:$0xf]
        %v306 = vld [vmem:[%s1 + $0x118] sm:$0xf]
        %v307 = vld [vmem:[%s1 + $0x11c] sm:$0xf]
        %v308 = vld [vmem:[%s1 + $0x120] sm:$0xf]
        %v309 = vld [vmem:[%s1 + $0x124] sm:$0xf]
        %v310 = vld [vmem:[%s1 + $0x128] sm:$0xf]
        %v311 = vld [vmem:[%s1 + $0x12c] sm:$0xf]
        %v312 = vld [vmem:[%s1 + $0x130] sm:$0xf]
        %v313 = vld [vmem:[%s1 + $0x134] sm:$0xf]
        %v314 = vld [vmem:[%s1 + $0x138] sm:$0xf]
        %v315 = vld [vmem:[%s1 + $0x13c] sm:$0xf]
        %v316 = vld [vmem:[%s1 + $0x140] sm:$0xf]
        %v317 = vld [vmem:[%s1 + $0x144] sm:$0xf]
        %v318 = vld [vmem:[%s1 + $0x148] sm:$0xf]
        %v319 = vld [vmem:[%s1 + $0x14c] sm:$0xf]
        %v320 = vld [vmem:[%s1 + $0x150] sm:$0xf]
        %v321 = vld [vmem:[%s1 + $0x154] sm:$0xf]
        %v322 = vld [vmem:[%s1 + $0x158] sm:$0xf]
        %v323 = vld [vmem:[%s1 + $0x15c] sm:$0xf]
        %v324 = vld [vmem:[%s1 + $0x160] sm:$0xf]
        %v325 = vld [vmem:[%s1 + $0x164] sm:$0xf]
        %v326 = vld [vmem:[%s1 + $0x168] sm:$0xf]
        %v327 = vld [vmem:[%s1 + $0x16c] sm:$0xf]
        %v328 = vld [vmem:[%s1 + $0x170] sm:$0xf]
        %v329 = vld [vmem:[%s1 + $0x174] sm:$0xf]
        %v330 = vld [vmem:[%s1 + $0x178] sm:$0xf]
        %v331 = vld [vmem:[%s1 + $0x17c] sm:$0xf]
        %s332 = sld [smem:[#allocation2]]
        %v333 = vstv %s332
        %v373 = vunpack.c.l.b16 %v197
        %v374 = vunpack.c.h.b16 %v197
        %v375 = vunpack.c.l.b16 %v198
        %v376 = vunpack.c.h.b16 %v198
        %v377 = vunpack.c.l.b16 %v199
        %v378 = vunpack.c.h.b16 %v199
        %v379 = vunpack.c.l.b16 %v200
        %v380 = vunpack.c.h.b16 %v200
        %v381 = vunpack.c.l.b16 %v201
        %v382 = vunpack.c.h.b16 %v201
        %v383 = vunpack.c.l.b16 %v202
        %v384 = vunpack.c.h.b16 %v202
        %v385 = vunpack.c.l.b16 %v203
        %v386 = vunpack.c.h.b16 %v203
        %v387 = vunpack.c.l.b16 %v204
        %v388 = vunpack.c.h.b16 %v204
        %v389 = vunpack.c.l.b16 %v205
        %v390 = vunpack.c.h.b16 %v205
        %v391 = vunpack.c.l.b16 %v206
        %v392 = vunpack.c.h.b16 %v206
        %v393 = vunpack.c.l.b16 %v207
        %v394 = vunpack.c.h.b16 %v207
        %v395 = vunpack.c.l.b16 %v208
        %v396 = vunpack.c.h.b16 %v208
        %v397 = vunpack.c.l.b16 %v209
        %v398 = vunpack.c.h.b16 %v209
        %v399 = vunpack.c.l.b16 %v210
        %v400 = vunpack.c.h.b16 %v210
        %v401 = vunpack.c.l.b16 %v211
        %v402 = vunpack.c.h.b16 %v211
        %v403 = vunpack.c.l.b16 %v212
        %v404 = vunpack.c.h.b16 %v212
        %v405 = vunpack.c.l.b16 %v213
        %v406 = vunpack.c.h.b16 %v213
        %v407 = vunpack.c.l.b16 %v214
        %v408 = vunpack.c.h.b16 %v214
        %v409 = vunpack.c.l.b16 %v215
        %v410 = vunpack.c.h.b16 %v215
        %v411 = vunpack.c.l.b16 %v216
        %v412 = vunpack.c.h.b16 %v216
        %v413 = vunpack.c.l.b16 %v217
        %v414 = vunpack.c.h.b16 %v217
        %v415 = vunpack.c.l.b16 %v218
        %v416 = vunpack.c.h.b16 %v218
        %v417 = vunpack.c.l.b16 %v219
        %v418 = vunpack.c.h.b16 %v219
        %v419 = vunpack.c.l.b16 %v220
        %v420 = vunpack.c.h.b16 %v220
        %v421 = vunpack.c.l.b16 %v221
        %v422 = vunpack.c.h.b16 %v221
        %v423 = vunpack.c.l.b16 %v222
        %v424 = vunpack.c.h.b16 %v222
        %v425 = vunpack.c.l.b16 %v223
        %v426 = vunpack.c.h.b16 %v223
        %v427 = vunpack.c.l.b16 %v224
        %v428 = vunpack.c.h.b16 %v224
        %v429 = vunpack.c.l.b16 %v225
        %v430 = vunpack.c.h.b16 %v225
        %v431 = vunpack.c.l.b16 %v226
        %v432 = vunpack.c.h.b16 %v226
        %v433 = vunpack.c.l.b16 %v227
        %v434 = vunpack.c.h.b16 %v227
        %v435 = vunpack.c.l.b16 %v228
        %v436 = vunpack.c.h.b16 %v228
        %v437 = vunpack.c.l.b16 %v229
        %v438 = vunpack.c.h.b16 %v229
        %v439 = vunpack.c.l.b16 %v230
        %v440 = vunpack.c.h.b16 %v230
        %v441 = vunpack.c.l.b16 %v231
        %v442 = vunpack.c.h.b16 %v231
        %v443 = vunpack.c.l.b16 %v232
        %v444 = vunpack.c.h.b16 %v232
        %v445 = vunpack.c.l.b16 %v233
        %v446 = vunpack.c.h.b16 %v233
        %v447 = vunpack.c.l.b16 %v234
        %v448 = vunpack.c.h.b16 %v234
        %v449 = vunpack.c.l.b16 %v235
        %v450 = vunpack.c.h.b16 %v235
        %v451 = vpack.c.b16 %v379, %v373
        %v452 = vpack.c.b16 %v380, %v374
        %v453 = vpack.c.b16 %v381, %v375
        %v454 = vpack.c.b16 %v382, %v376
        %v455 = vpack.c.b16 %v383, %v377
        %v456 = vpack.c.b16 %v384, %v378
        %v457 = vpack.c.b16 %v391, %v385
        %v458 = vpack.c.b16 %v392, %v386
        %v459 = vpack.c.b16 %v393, %v387
        %v460 = vpack.c.b16 %v394, %v388
        %v461 = vpack.c.b16 %v395, %v389
        %v462 = vpack.c.b16 %v396, %v390
        %v463 = vpack.c.b16 %v403, %v397
        %v464 = vpack.c.b16 %v404, %v398
        %v465 = vpack.c.b16 %v405, %v399
        %v466 = vpack.c.b16 %v406, %v400
        %v467 = vpack.c.b16 %v407, %v401
        %v468 = vpack.c.b16 %v408, %v402
        %v469 = vpack.c.b16 %v415, %v409
        %v470 = vpack.c.b16 %v416, %v410
        %v471 = vpack.c.b16 %v417, %v411
        %v472 = vpack.c.b16 %v418, %v412
        %v473 = vpack.c.b16 %v419, %v413
        %v474 = vpack.c.b16 %v420, %v414
        %v475 = vpack.c.b16 %v427, %v421
        %v476 = vpack.c.b16 %v428, %v422
        %v477 = vpack.c.b16 %v429, %v423
        %v478 = vpack.c.b16 %v430, %v424
        %v479 = vpack.c.b16 %v431, %v425
        %v480 = vpack.c.b16 %v432, %v426
        %v481 = vpack.c.b16 %v439, %v433
        %v482 = vpack.c.b16 %v440, %v434
        %v483 = vpack.c.b16 %v441, %v435
        %v484 = vpack.c.b16 %v442, %v436
        %v485 = vpack.c.b16 %v443, %v437
        %v486 = vpack.c.b16 %v444, %v438
        %v487 = vpack.c.b16 %v445, %v445
        %v488 = vpack.c.b16 %v446, %v446
        %v489 = vpack.c.b16 %v447, %v447
        %v490 = vpack.c.b16 %v448, %v448
        %v491 = vpack.c.b16 %v449, %v449
        %v492 = vpack.c.b16 %v450, %v450
        %v631 = vunpack.c.l.b16 %v236
        %v632 = vunpack.c.l.b16 %v237
        %v633 = vunpack.c.l.b16 %v238
        %v634 = vunpack.c.l.b16 %v239
        %v635 = vunpack.c.l.b16 %v240
        %v636 = vunpack.c.l.b16 %v241
        %v637 = vunpack.c.l.b16 %v242
        %v638 = vunpack.c.l.b16 %v243
        %v639 = vunpack.c.l.b16 %v244
        %v640 = vunpack.c.l.b16 %v245
        %v641 = vunpack.c.l.b16 %v246
        %v642 = vunpack.c.l.b16 %v247
        %v643 = vunpack.c.l.b16 %v248
        %v644 = vunpack.c.l.b16 %v249
        %v645 = vunpack.c.l.b16 %v250
        %v646 = vunpack.c.l.b16 %v251
        %v647 = vunpack.c.l.b16 %v252
        %v648 = vunpack.c.l.b16 %v253
        %v649 = vunpack.c.l.b16 %v254
        %v650 = vunpack.c.l.b16 %v255
        %v651 = vunpack.c.l.b16 %v256
        %v652 = vunpack.c.l.b16 %v257
        %v653 = vunpack.c.l.b16 %v258
        %v654 = vunpack.c.l.b16 %v259
        %v655 = vunpack.c.l.b16 %v260
        %v656 = vunpack.c.l.b16 %v261
        %v657 = vunpack.c.l.b16 %v262
        %v658 = vunpack.c.l.b16 %v263
        %v659 = vunpack.c.l.b16 %v264
        %v660 = vunpack.c.l.b16 %v265
        %v661 = vunpack.c.l.b16 %v266
        %v662 = vunpack.c.l.b16 %v267
        %v663 = vunpack.c.l.b16 %v268
        %v664 = vunpack.c.l.b16 %v269
        %v665 = vunpack.c.l.b16 %v270
        %v666 = vunpack.c.l.b16 %v271
        %v667 = vunpack.c.l.b16 %v272
        %v668 = vunpack.c.l.b16 %v273
        %v669 = vunpack.c.l.b16 %v274
        %v670 = vunpack.c.l.b16 %v275
        %v671 = vunpack.c.l.b16 %v276
        %v672 = vunpack.c.l.b16 %v277
        %v673 = vunpack.c.l.b16 %v278
        %v674 = vunpack.c.l.b16 %v279
        %v675 = vunpack.c.l.b16 %v280
        %v676 = vunpack.c.l.b16 %v281
        %v677 = vunpack.c.l.b16 %v282
        %v678 = vunpack.c.l.b16 %v283
        %v679 = vunpack.c.l.b16 %v284
        %v680 = vunpack.c.l.b16 %v285
        %v681 = vunpack.c.l.b16 %v286
        %v682 = vunpack.c.l.b16 %v287
        %v683 = vunpack.c.l.b16 %v288
        %v684 = vunpack.c.l.b16 %v289
        %v685 = vunpack.c.l.b16 %v290
        %v686 = vunpack.c.l.b16 %v291
        %v687 = vunpack.c.l.b16 %v292
        %v688 = vunpack.c.l.b16 %v293
        %v689 = vunpack.c.l.b16 %v294
        %v690 = vunpack.c.l.b16 %v295
        %v691 = vunpack.c.l.b16 %v296
        %v692 = vunpack.c.l.b16 %v297
        %v693 = vunpack.c.l.b16 %v298
        %v694 = vunpack.c.l.b16 %v299
        %v695 = vunpack.c.l.b16 %v300
        %v696 = vunpack.c.l.b16 %v301
        %v697 = vunpack.c.l.b16 %v302
        %v698 = vunpack.c.l.b16 %v303
        %v699 = vunpack.c.l.b16 %v304
        %v700 = vunpack.c.l.b16 %v305
        %v701 = vunpack.c.l.b16 %v306
        %v702 = vunpack.c.l.b16 %v307
        %v703 = vunpack.c.l.b16 %v308
        %v704 = vunpack.c.l.b16 %v309
        %v705 = vunpack.c.l.b16 %v310
        %v706 = vunpack.c.l.b16 %v311
        %v707 = vunpack.c.l.b16 %v312
        %v708 = vunpack.c.l.b16 %v313
        %v709 = vunpack.c.l.b16 %v314
        %v710 = vunpack.c.l.b16 %v315
        %v711 = vunpack.c.l.b16 %v316
        %v712 = vunpack.c.l.b16 %v317
        %v713 = vunpack.c.l.b16 %v318
        %v714 = vunpack.c.l.b16 %v319
        %v715 = vunpack.c.l.b16 %v320
        %v716 = vunpack.c.l.b16 %v321
        %v717 = vunpack.c.l.b16 %v322
        %v718 = vunpack.c.l.b16 %v323
        %v719 = vunpack.c.l.b16 %v324
        %v720 = vunpack.c.l.b16 %v325
        %v721 = vunpack.c.l.b16 %v326
        %v722 = vunpack.c.l.b16 %v327
        %v723 = vunpack.c.l.b16 %v328
        %v724 = vunpack.c.l.b16 %v329
        %v725 = vunpack.c.l.b16 %v330
        %v726 = vunpack.c.l.b16 %v331
        %v727 = vpack.c.b16 %v632, %v631
        %v728 = vpack.c.b16 %v634, %v633
        %v729 = vpack.c.b16 %v636, %v635
        %v730 = vpack.c.b16 %v638, %v637
        %v731 = vpack.c.b16 %v640, %v639
        %v732 = vpack.c.b16 %v642, %v641
        %v733 = vpack.c.b16 %v644, %v643
        %v734 = vpack.c.b16 %v646, %v645
        %v735 = vpack.c.b16 %v648, %v647
        %v736 = vpack.c.b16 %v650, %v649
        %v737 = vpack.c.b16 %v652, %v651
        %v738 = vpack.c.b16 %v654, %v653
        %v739 = vpack.c.b16 %v656, %v655
        %v740 = vpack.c.b16 %v658, %v657
        %v741 = vpack.c.b16 %v660, %v659
        %v742 = vpack.c.b16 %v662, %v661
        %v743 = vpack.c.b16 %v664, %v663
        %v744 = vpack.c.b16 %v666, %v665
        %v745 = vpack.c.b16 %v668, %v667
        %v746 = vpack.c.b16 %v670, %v669
        %v747 = vpack.c.b16 %v672, %v671
        %v748 = vpack.c.b16 %v674, %v673
        %v749 = vpack.c.b16 %v676, %v675
        %v750 = vpack.c.b16 %v678, %v677
        %v751 = vpack.c.b16 %v680, %v679
        %v752 = vpack.c.b16 %v682, %v681
        %v753 = vpack.c.b16 %v684, %v683
        %v754 = vpack.c.b16 %v686, %v685
        %v755 = vpack.c.b16 %v688, %v687
        %v756 = vpack.c.b16 %v690, %v689
        %v757 = vpack.c.b16 %v692, %v691
        %v758 = vpack.c.b16 %v694, %v693
        %v759 = vpack.c.b16 %v696, %v695
        %v760 = vpack.c.b16 %v698, %v697
        %v761 = vpack.c.b16 %v700, %v699
        %v762 = vpack.c.b16 %v702, %v701
        %v763 = vpack.c.b16 %v704, %v703
        %v764 = vpack.c.b16 %v706, %v705
        %v765 = vpack.c.b16 %v708, %v707
        %v766 = vpack.c.b16 %v710, %v709
        %v767 = vpack.c.b16 %v712, %v711
        %v768 = vpack.c.b16 %v714, %v713
        %v769 = vpack.c.b16 %v716, %v715
        %v770 = vpack.c.b16 %v718, %v717
        %v771 = vpack.c.b16 %v720, %v719
        %v772 = vpack.c.b16 %v722, %v721
        %v773 = vpack.c.b16 %v724, %v723
        %v774 = vpack.c.b16 %v726, %v725
        %823 = vmatpush.bf16.msra.mxu0 %v734
        %824 = vmatpush.bf16.msra.mxu0 %v733
        %825 = vmatpush.bf16.msra.mxu0 %v732
        %826 = vmatpush.bf16.msra.mxu0 %v731
        %827 = vmatpush.bf16.msra.mxu0 %v730
        %828 = vmatpush.bf16.msra.mxu0 %v729
        %829 = vmatpush.bf16.msra.mxu0 %v728
        %830 = vmatpush.bf16.msra.mxu0 %v727
        %831 = vmatmul.bf16.gmra.mxu0 %v451
        %v832 = vpop.f32.mrf.mxu0
        %v833 = vadd.f32 %v333, %v832
        %v834 = vpop.f32.mrf.mxu0
        %v835 = vadd.f32 %v333, %v834
        %836 = vmatmul.bf16.gmra.mxu0 %v457
        %v837 = vpop.f32.mrf.mxu0
        %v838 = vadd.f32 %v333, %v837
        %v839 = vpop.f32.mrf.mxu0
        %v840 = vadd.f32 %v333, %v839
        %841 = vmatmul.bf16.gmra.mxu0 %v463
        %v842 = vpop.f32.mrf.mxu0
        %v843 = vadd.f32 %v333, %v842
        %v844 = vpop.f32.mrf.mxu0
        %v845 = vadd.f32 %v333, %v844
        %846 = vmatmul.bf16.gmra.mxu0 %v469
        %v847 = vpop.f32.mrf.mxu0
        %v848 = vadd.f32 %v333, %v847
        %v849 = vpop.f32.mrf.mxu0
        %v850 = vadd.f32 %v333, %v849
        %851 = vmatmul.bf16.gmra.mxu0 %v475
        %v852 = vpop.f32.mrf.mxu0
        %v853 = vadd.f32 %v333, %v852
        %v854 = vpop.f32.mrf.mxu0
        %v855 = vadd.f32 %v333, %v854
        %856 = vmatmul.bf16.gmra.mxu0 %v481
        %v857 = vpop.f32.mrf.mxu0
        %v858 = vadd.f32 %v333, %v857
        %v859 = vpop.f32.mrf.mxu0
        %v860 = vadd.f32 %v333, %v859
        %861 = vmatmul.bf16.gmra.mxu0 %v487
        %v862 = vpop.f32.mrf.mxu0
        %v863 = vadd.f32 %v333, %v862
        %v864 = vpop.f32.mrf.mxu0
        %865 = vdwg.mxu0
        %866 = vmatpush.bf16.msra.mxu0 %v742
        %867 = vmatpush.bf16.msra.mxu0 %v741
        %868 = vmatpush.bf16.msra.mxu0 %v740
        %869 = vmatpush.bf16.msra.mxu0 %v739
        %870 = vmatpush.bf16.msra.mxu0 %v738
        %871 = vmatpush.bf16.msra.mxu0 %v737
        %872 = vmatpush.bf16.msra.mxu0 %v736
        %873 = vmatpush.bf16.msra.mxu0 %v735
        %874 = vmatmul.bf16.gmra.mxu0 %v452
        %v875 = vpop.f32.mrf.mxu0
        %v876 = vadd.f32 %v833, %v875
        %v877 = vpop.f32.mrf.mxu0
        %v878 = vadd.f32 %v835, %v877
        %879 = vmatmul.bf16.gmra.mxu0 %v458
        %v880 = vpop.f32.mrf.mxu0
        %v881 = vadd.f32 %v838, %v880
        %v882 = vpop.f32.mrf.mxu0
        %v883 = vadd.f32 %v840, %v882
        %884 = vmatmul.bf16.gmra.mxu0 %v464
        %v885 = vpop.f32.mrf.mxu0
        %v886 = vadd.f32 %v843, %v885
        %v887 = vpop.f32.mrf.mxu0
        %v888 = vadd.f32 %v845, %v887
        %889 = vmatmul.bf16.gmra.mxu0 %v470
        %v890 = vpop.f32.mrf.mxu0
        %v891 = vadd.f32 %v848, %v890
        %v892 = vpop.f32.mrf.mxu0
        %v893 = vadd.f32 %v850, %v892
        %894 = vmatmul.bf16.gmra.mxu0 %v476
        %v895 = vpop.f32.mrf.mxu0
        %v896 = vadd.f32 %v853, %v895
        %v897 = vpop.f32.mrf.mxu0
        %v898 = vadd.f32 %v855, %v897
        %899 = vmatmul.bf16.gmra.mxu0 %v482
        %v900 = vpop.f32.mrf.mxu0
        %v901 = vadd.f32 %v858, %v900
        %v902 = vpop.f32.mrf.mxu0
        %v903 = vadd.f32 %v860, %v902
        %904 = vmatmul.bf16.gmra.mxu0 %v488
        %v905 = vpop.f32.mrf.mxu0
        %v906 = vadd.f32 %v863, %v905
        %v907 = vpop.f32.mrf.mxu0
        %908 = vdwg.mxu0
        %909 = vmatpush.bf16.msra.mxu0 %v750
        %910 = vmatpush.bf16.msra.mxu0 %v749
        %911 = vmatpush.bf16.msra.mxu0 %v748
        %912 = vmatpush.bf16.msra.mxu0 %v747
        %913 = vmatpush.bf16.msra.mxu0 %v746
        %914 = vmatpush.bf16.msra.mxu0 %v745
        %915 = vmatpush.bf16.msra.mxu0 %v744
        %916 = vmatpush.bf16.msra.mxu0 %v743
        %917 = vmatmul.bf16.gmra.mxu0 %v453
        %v918 = vpop.f32.mrf.mxu0
        %v919 = vadd.f32 %v876, %v918
        %v920 = vpop.f32.mrf.mxu0
        %v921 = vadd.f32 %v878, %v920
        %922 = vmatmul.bf16.gmra.mxu0 %v459
        %v923 = vpop.f32.mrf.mxu0
        %v924 = vadd.f32 %v881, %v923
        %v925 = vpop.f32.mrf.mxu0
        %v926 = vadd.f32 %v883, %v925
        %927 = vmatmul.bf16.gmra.mxu0 %v465
        %v928 = vpop.f32.mrf.mxu0
        %v929 = vadd.f32 %v886, %v928
        %v930 = vpop.f32.mrf.mxu0
        %v931 = vadd.f32 %v888, %v930
        %932 = vmatmul.bf16.gmra.mxu0 %v471
        %v933 = vpop.f32.mrf.mxu0
        %v934 = vadd.f32 %v891, %v933
        %v935 = vpop.f32.mrf.mxu0
        %v936 = vadd.f32 %v893, %v935
        %937 = vmatmul.bf16.gmra.mxu0 %v477
        %v938 = vpop.f32.mrf.mxu0
        %v939 = vadd.f32 %v896, %v938
        %v940 = vpop.f32.mrf.mxu0
        %v941 = vadd.f32 %v898, %v940
        %942 = vmatmul.bf16.gmra.mxu0 %v483
        %v943 = vpop.f32.mrf.mxu0
        %v944 = vadd.f32 %v901, %v943
        %v945 = vpop.f32.mrf.mxu0
        %v946 = vadd.f32 %v903, %v945
        %947 = vmatmul.bf16.gmra.mxu0 %v489
        %v948 = vpop.f32.mrf.mxu0
        %v949 = vadd.f32 %v906, %v948
        %v950 = vpop.f32.mrf.mxu0
        %951 = vdwg.mxu0
        %952 = vmatpush.bf16.msra.mxu0 %v758
        %953 = vmatpush.bf16.msra.mxu0 %v757
        %954 = vmatpush.bf16.msra.mxu0 %v756
        %955 = vmatpush.bf16.msra.mxu0 %v755
        %956 = vmatpush.bf16.msra.mxu0 %v754
        %957 = vmatpush.bf16.msra.mxu0 %v753
        %958 = vmatpush.bf16.msra.mxu0 %v752
        %959 = vmatpush.bf16.msra.mxu0 %v751
        %960 = vmatmul.bf16.gmra.mxu0 %v454
        %v961 = vpop.f32.mrf.mxu0
        %v962 = vadd.f32 %v919, %v961
        %v963 = vpop.f32.mrf.mxu0
        %v964 = vadd.f32 %v921, %v963
        %965 = vmatmul.bf16.gmra.mxu0 %v460
        %v966 = vpop.f32.mrf.mxu0
        %v967 = vadd.f32 %v924, %v966
        %v968 = vpop.f32.mrf.mxu0
        %v969 = vadd.f32 %v926, %v968
        %970 = vmatmul.bf16.gmra.mxu0 %v466
        %v971 = vpop.f32.mrf.mxu0
        %v972 = vadd.f32 %v929, %v971
        %v973 = vpop.f32.mrf.mxu0
        %v974 = vadd.f32 %v931, %v973
        %975 = vmatmul.bf16.gmra.mxu0 %v472
        %v976 = vpop.f32.mrf.mxu0
        %v977 = vadd.f32 %v934, %v976
        %v978 = vpop.f32.mrf.mxu0
        %v979 = vadd.f32 %v936, %v978
        %980 = vmatmul.bf16.gmra.mxu0 %v478
        %v981 = vpop.f32.mrf.mxu0
        %v982 = vadd.f32 %v939, %v981
        %v983 = vpop.f32.mrf.mxu0
        %v984 = vadd.f32 %v941, %v983
        %985 = vmatmul.bf16.gmra.mxu0 %v484
        %v986 = vpop.f32.mrf.mxu0
        %v987 = vadd.f32 %v944, %v986
        %v988 = vpop.f32.mrf.mxu0
        %v989 = vadd.f32 %v946, %v988
        %990 = vmatmul.bf16.gmra.mxu0 %v490
        %v991 = vpop.f32.mrf.mxu0
        %v992 = vadd.f32 %v949, %v991
        %v993 = vpop.f32.mrf.mxu0
        %994 = vdwg.mxu0
        %995 = vmatpush.bf16.msra.mxu0 %v766
        %996 = vmatpush.bf16.msra.mxu0 %v765
        %997 = vmatpush.bf16.msra.mxu0 %v764
        %998 = vmatpush.bf16.msra.mxu0 %v763
        %999 = vmatpush.bf16.msra.mxu0 %v762
        %1000 = vmatpush.bf16.msra.mxu0 %v761
        %1001 = vmatpush.bf16.msra.mxu0 %v760
        %1002 = vmatpush.bf16.msra.mxu0 %v759
        %1003 = vmatmul.bf16.gmra.mxu0 %v455
        %v1004 = vpop.f32.mrf.mxu0
        %v1005 = vadd.f32 %v962, %v1004
        %v1006 = vpop.f32.mrf.mxu0
        %v1007 = vadd.f32 %v964, %v1006
        %1008 = vmatmul.bf16.gmra.mxu0 %v461
        %v1009 = vpop.f32.mrf.mxu0
        %v1010 = vadd.f32 %v967, %v1009
        %v1011 = vpop.f32.mrf.mxu0
        %v1012 = vadd.f32 %v969, %v1011
        %1013 = vmatmul.bf16.gmra.mxu0 %v467
        %v1014 = vpop.f32.mrf.mxu0
        %v1015 = vadd.f32 %v972, %v1014
        %v1016 = vpop.f32.mrf.mxu0
        %v1017 = vadd.f32 %v974, %v1016
        %1018 = vmatmul.bf16.gmra.mxu0 %v473
        %v1019 = vpop.f32.mrf.mxu0
        %v1020 = vadd.f32 %v977, %v1019
        %v1021 = vpop.f32.mrf.mxu0
        %v1022 = vadd.f32 %v979, %v1021
        %1023 = vmatmul.bf16.gmra.mxu0 %v479
        %v1024 = vpop.f32.mrf.mxu0
        %v1025 = vadd.f32 %v982, %v1024
        %v1026 = vpop.f32.mrf.mxu0
        %v1027 = vadd.f32 %v984, %v1026
        %1028 = vmatmul.bf16.gmra.mxu0 %v485
        %v1029 = vpop.f32.mrf.mxu0
        %v1030 = vadd.f32 %v987, %v1029
        %v1031 = vpop.f32.mrf.mxu0
        %v1032 = vadd.f32 %v989, %v1031
        %1033 = vmatmul.bf16.gmra.mxu0 %v491
        %v1034 = vpop.f32.mrf.mxu0
        %v1035 = vadd.f32 %v992, %v1034
        %v1036 = vpop.f32.mrf.mxu0
        %1037 = vdwg.mxu0
        %1038 = vmatpush.bf16.msra.mxu0 %v774
        %1039 = vmatpush.bf16.msra.mxu0 %v773
        %1040 = vmatpush.bf16.msra.mxu0 %v772
        %1041 = vmatpush.bf16.msra.mxu0 %v771
        %1042 = vmatpush.bf16.msra.mxu0 %v770
        %1043 = vmatpush.bf16.msra.mxu0 %v769
        %1044 = vmatpush.bf16.msra.mxu0 %v768
        %1045 = vmatpush.bf16.msra.mxu0 %v767
        %1046 = vmatmul.bf16.gmra.mxu0 %v456
        %v1047 = vpop.f32.mrf.mxu0
        %v1048 = vadd.f32 %v1005, %v1047
        %v1049 = vpop.f32.mrf.mxu0
        %v1050 = vadd.f32 %v1007, %v1049
        %1051 = vmatmul.bf16.gmra.mxu0 %v462
        %v1052 = vpop.f32.mrf.mxu0
        %v1053 = vadd.f32 %v1010, %v1052
        %v1054 = vpop.f32.mrf.mxu0
        %v1055 = vadd.f32 %v1012, %v1054
        %1056 = vmatmul.bf16.gmra.mxu0 %v468
        %v1057 = vpop.f32.mrf.mxu0
        %v1058 = vadd.f32 %v1015, %v1057
        %v1059 = vpop.f32.mrf.mxu0
        %v1060 = vadd.f32 %v1017, %v1059
        %1061 = vmatmul.bf16.gmra.mxu0 %v474
        %v1062 = vpop.f32.mrf.mxu0
        %v1063 = vadd.f32 %v1020, %v1062
        %v1064 = vpop.f32.mrf.mxu0
        %v1065 = vadd.f32 %v1022, %v1064
        %1066 = vmatmul.bf16.gmra.mxu0 %v480
        %v1067 = vpop.f32.mrf.mxu0
        %v1068 = vadd.f32 %v1025, %v1067
        %v1069 = vpop.f32.mrf.mxu0
        %v1070 = vadd.f32 %v1027, %v1069
        %1071 = vmatmul.bf16.gmra.mxu0 %v486
        %v1072 = vpop.f32.mrf.mxu0
        %v1073 = vadd.f32 %v1030, %v1072
        %v1074 = vpop.f32.mrf.mxu0
        %v1075 = vadd.f32 %v1032, %v1074
        %1076 = vmatmul.bf16.gmra.mxu0 %v492
        %v1077 = vpop.f32.mrf.mxu0
        %v1078 = vadd.f32 %v1035, %v1077
        %v1079 = vpop.f32.mrf.mxu0
        %1080 = vdwg.mxu0
        %vm1081 = vcmask 7168
        %1082 = vst.msk [vmem:[%s195] sm:$0xff] %vm1081, %v1048
        %1083 = vst.msk [vmem:[%s195 + $0x8] sm:$0xff] %vm1081, %v1050
        %1084 = vst.msk [vmem:[%s195 + $0x10] sm:$0xff] %vm1081, %v1053
        %1085 = vst.msk [vmem:[%s195 + $0x18] sm:$0xff] %vm1081, %v1055
        %1086 = vst.msk [vmem:[%s195 + $0x20] sm:$0xff] %vm1081, %v1058
        %1087 = vst.msk [vmem:[%s195 + $0x28] sm:$0xff] %vm1081, %v1060
        %1088 = vst.msk [vmem:[%s195 + $0x30] sm:$0xff] %vm1081, %v1063
        %1089 = vst.msk [vmem:[%s195 + $0x38] sm:$0xff] %vm1081, %v1065
        %1090 = vst.msk [vmem:[%s195 + $0x40] sm:$0xff] %vm1081, %v1068
        %1091 = vst.msk [vmem:[%s195 + $0x48] sm:$0xff] %vm1081, %v1070
        %1092 = vst.msk [vmem:[%s195 + $0x50] sm:$0xff] %vm1081, %v1073
        %1093 = vst.msk [vmem:[%s195 + $0x58] sm:$0xff] %vm1081, %v1075
        %1094 = vst.msk [vmem:[%s195 + $0x60] sm:$0xff] %vm1081, %v1078
        %s1095 = smul.u32 13, %s18
        %p1096 = scmp.lt.s32.totalorder %s1095, 25
        %s1097 = scalar_select %p1096, %s1095, 25
        %s1098 = smul.addr %s1097, 8
        %s1099 = scalar_lea.vmem %s3, %s1098
        // Predicated region
        $region37: #{tpu_custom_call.1} parent=31 // pred_check
          %p1100 = pneg %p104
        $region38: #{tpu_custom_call.1} parent=31 // pred_check_branch
          %1102 = sbr.rel (%p1100) target = $region40
        $region39: #{tpu_custom_call.1} parent=31 // pred_region
          %s1103 = smul.u32 13, %s18
        $region40: #{tpu_custom_call.1} parent=31 // pred_fallthru
          _
      $region32: #{tpu_custom_call.1} parent=5 // pred_fallthru
        _
      %p1104 = scmp.le.s32.totalorder 2, %s13
      // Predicated region
      $region41: #{tpu_custom_call.1} parent=5 // pred_check
        %p1105 = pneg %p1104
      $region42: #{tpu_custom_call.1} parent=5 // pred_check_branch
        %1107 = sbr.rel (%p1105) target = $region44
      $region43: #{tpu_custom_call.1} parent=5 // pred_region
        %s1108 = ssub.s32 %s13, 2
        // Predicated region
        $region45: #{tpu_custom_call.1} parent=43 // pred_check
          %p1109 = pneg %p110
        $region46: #{tpu_custom_call.1} parent=43 // pred_check_branch
          %1111 = sbr.rel (%p1109) target = $region48
        $region47: #{tpu_custom_call.1} parent=43 // pred_region
          %s1112 = smul.u32 13, %s19
          %p1113 = scmp.lt.s32.totalorder %s1112, 25
          %s1114 = scalar_select %p1113, %s1112, 25
          %s1115 = smul.addr %s1114, 8
          %s1116 = scalar_lea.vmem %s3, %s1115
        $region48: #{tpu_custom_call.1} parent=43 // pred_fallthru
          _
      $region44: #{tpu_custom_call.1} parent=5 // pred_fallthru
        _
    $region6: #{tpu_custom_call.1} parent=1 // loop_footer
      %s17 = sadd.s32 1, %s13
    $region7: #{tpu_custom_call.1} parent=1 // loop_footer_branch
      %12 = sbr.rel target = $region3
    $region8: #{tpu_custom_call.1} parent=1 // loop_exit
      _
    %1117 = vsyncpa [#allocation4], 1
    %s1118 = scalar_lea.sflag [#allocation4], 1
    %1119 = vsyncpa %s1118, 1

</llo_original>
